<compile_context>
chip_gen: v5e
topology: v5e:2x2
jax: 0.10.0
libtpu: 0.0.40
codegen_flags: <defaults>
</compile_context>

<pallas_src>
import jax
import jax.numpy as jnp
from jax.experimental import pallas as pl
from jax.experimental.pallas import tpu as pltpu

# ---- small, module-consistent sizes ----
B = 2          # batch
S = 8          # sequence length
E = 32         # d_model
H = 4          # n_heads
HD = E // H    # head_dim
N = H * B * S  # rows of the head-stacked layout


def mha_kernel(x_ref, wqkv_ref, wo_ref, bqkv_ref, bo_ref, bias_ref, o_ref):
    # Entire problem lives in VMEM: x is (B*S, E) = (16, 32).
    x = x_ref[...]

    # --- fused QKV projection: one (B*S, E) @ (E, 3E) MXU matmul ---
    # (1/sqrt(HD) already folded into the q-columns of wqkv/bqkv at param-prep time.)
    qkv = jnp.dot(x, wqkv_ref[...], preferred_element_type=jnp.float32) + bqkv_ref[...]
    q = qkv[:, 0 * E:1 * E]
    k = qkv[:, 1 * E:2 * E]
    v = qkv[:, 2 * E:3 * E]

    # --- head relayout: (B*S, E) -> (B*S, H, HD) -> (H, B*S, HD) -> (H*B*S, HD) ---
    # Single XLU-aware transform per tensor instead of per-head slices + concat.
    def to_heads(t):
        return pltpu.einshape("mhd->hmd", t.reshape(B * S, H, HD)).reshape(N, HD)

    qh = to_heads(q)    # (64, 8), rows ordered (head, batch, seq)
    kh = to_heads(k)
    vh = to_heads(v)

    # --- one full-width scores matmul + precomputed additive block-diagonal bias ---
    s = jnp.dot(qh, kh.T, preferred_element_type=jnp.float32) + bias_ref[...]   # (64, 64)

    # --- softmax (max-subtracted; exact reciprocal for torch parity) ---
    s = s - jnp.max(s, axis=-1, keepdims=True)
    p = jnp.exp(s)
    p = p * pl.reciprocal(jnp.sum(p, axis=-1, keepdims=True), approx=False)

    # --- context: one full-width p @ v matmul, then inverse head relayout ---
    ctx_h = jnp.dot(p, vh, preferred_element_type=jnp.float32)                  # (64, 8)
    ctx = pltpu.einshape("hmd->mhd", ctx_h.reshape(H, B * S, HD)).reshape(B * S, E)

    # --- output projection ---
    out = jnp.dot(ctx, wo_ref[...], preferred_element_type=jnp.float32) + bo_ref[...]
    o_ref[...] = out.astype(o_ref.dtype)
    # TODO(synk): dropout (args.dropout) only applies in training mode; eval semantics reproduced.


def mha_pallas(x, wqkv_t_scaled, wo_t, bqkv_scaled, bo, attn_bias):
    x_flat = x.reshape(B * S, E)          # wrapper-side reshape (free, row-major)
    vmem = lambda: pl.BlockSpec(memory_space=pltpu.MemorySpace.VMEM)
    out_flat = pl.pallas_call(
        mha_kernel,
        out_shape=jax.ShapeDtypeStruct((B * S, E), x.dtype),
        in_specs=[vmem() for _ in range(6)],
        out_specs=vmem(),
    )(x_flat, wqkv_t_scaled, wo_t, bqkv_scaled, bo, attn_bias)
    return out_flat.reshape(B, S, E)      # wrapper-side reshape back to (B, S, E)


def build_block_diag_bias():
    # Additive bias over the head-stacked (N, N) scores: 0 where rows/cols belong to
    # the same (head, batch) block (i//S == j//S), -1e30 elsewhere.  Built once.
    blk = jnp.arange(N, dtype=jnp.int32) // S
    same = blk[:, None] == blk[None, :]
    return jnp.where(same, 0.0, -1e30).astype(jnp.float32)


def mha_reference(x, wqkv_t, wo_t, bqkv, bo):
    # Pure-JAX reference matching torch.nn.MultiheadAttention (eval mode), using the
    # UNSCALED parameters (scale applied explicitly here).
    qkv = x @ wqkv_t + bqkv
    q, k, v = qkv[..., :E], qkv[..., E:2 * E], qkv[..., 2 * E:]
    qh = q.reshape(B, S, H, HD).transpose(0, 2, 1, 3)
    kh = k.reshape(B, S, H, HD).transpose(0, 2, 1, 3)
    vh = v.reshape(B, S, H, HD).transpose(0, 2, 1, 3)
    s = jnp.einsum("bhqd,bhkd->bhqk", qh, kh) / (HD ** 0.5)
    p = jax.nn.softmax(s, axis=-1)
    ctx = jnp.einsum("bhqk,bhkd->bhqd", p, vh)
    ctx = ctx.transpose(0, 2, 1, 3).reshape(B, S, E)
    return ctx @ wo_t + bo


if __name__ == "__main__":
    key = jax.random.PRNGKey(0)
    kx, kin, kb, kwo, kbo = jax.random.split(key, 5)

    x = jax.random.normal(kx, (B, S, E), dtype=jnp.float32)

    # nn.MultiheadAttention parameter shapes:
    #   in_proj_weight: (3E, E), in_proj_bias: (3E,)
    #   out_proj.weight: (E, E), out_proj.bias: (E,)
    in_proj_weight = jax.random.normal(kin, (3 * E, E), dtype=jnp.float32) * 0.1
    in_proj_bias = jax.random.normal(kb, (3 * E,), dtype=jnp.float32) * 0.1
    out_proj_weight = jax.random.normal(kwo, (E, E), dtype=jnp.float32) * 0.1
    out_proj_bias = jax.random.normal(kbo, (E,), dtype=jnp.float32) * 0.1

    # Pre-transpose / fuse so the kernel does one x @ Wqkv^T matmul.
    wqkv_t = in_proj_weight.T                        # (E, 3E), columns ordered [q | k | v]
    bqkv = in_proj_bias.reshape(1, 3 * E)
    wo_t = out_proj_weight.T                         # (E, E)
    bo = out_proj_bias.reshape(1, E)

    # Parameter-prep-time folding of the 1/sqrt(HD) softmax scale into the q columns
    # (done once here, NOT per call in the jitted wrapper).
    scale = 1.0 / (HD ** 0.5)
    col_scale = jnp.concatenate(
        [jnp.full((E,), scale, jnp.float32), jnp.ones((2 * E,), jnp.float32)])
    wqkv_t_scaled = wqkv_t * col_scale[None, :]
    bqkv_scaled = bqkv * col_scale[None, :]

    # Precomputed additive block-diagonal mask (built once, 16 KiB).
    attn_bias = build_block_diag_bias()

    out = mha_pallas(x, wqkv_t_scaled, wo_t, bqkv_scaled, bo, attn_bias)
    out = jax.block_until_ready(out)

    ref = mha_reference(x, wqkv_t, wo_t, bqkv, bo)
    assert out.shape == (B, S, E)
    # Tolerance covers MXU default-precision f32 matmuls; the softmax divide is exact now.
    assert jnp.allclose(out, ref, atol=1e-3, rtol=1e-3), "Pallas output mismatch vs reference"

    print("KERNEL_OK")
</pallas_src>

<mosaic_0001>
module attributes {stable_mosaic.version = 11 : i64} {
  func.func @mha_kernel(%arg0: memref<16x32xf32, #tpu.memory_space<vmem>>, %arg1: memref<32x96xf32, #tpu.memory_space<vmem>>, %arg2: memref<32x32xf32, #tpu.memory_space<vmem>>, %arg3: memref<1x96xf32, #tpu.memory_space<vmem>>, %arg4: memref<1x32xf32, #tpu.memory_space<vmem>>, %arg5: memref<64x64xf32, #tpu.memory_space<vmem>>, %arg6: memref<16x32xf32, #tpu.memory_space<vmem>>) attributes {dimension_semantics = [], scalar_prefetch = 0 : i64, scratch_operands = 0 : i64, tpu.core_type = #tpu.core_type<tc>} {
    %c0 = arith.constant 0 : index
    %c0_0 = arith.constant 0 : index
    %0 = vector.load %arg0[%c0, %c0_0] : memref<16x32xf32, #tpu.memory_space<vmem>>, vector<16x32xf32>
    %c0_1 = arith.constant 0 : index
    %c0_2 = arith.constant 0 : index
    %1 = vector.load %arg1[%c0_1, %c0_2] : memref<32x96xf32, #tpu.memory_space<vmem>>, vector<32x96xf32>
    %cst = arith.constant dense<0.000000e+00> : vector<16x96xf32>
    %2 = tpu.matmul %0, %1, %cst {dimension_numbers = #tpu.dot_dimension_numbers<[1], [0], [0], [1], [0, 0, 1, 1], [], []>} : vector<16x32xf32>, vector<32x96xf32>, vector<16x96xf32> -> vector<16x96xf32>
    %c0_3 = arith.constant 0 : index
    %c0_4 = arith.constant 0 : index
    %3 = vector.load %arg3[%c0_3, %c0_4] : memref<1x96xf32, #tpu.memory_space<vmem>>, vector<1x96xf32>
    %4 = vector.broadcast %3 : vector<1x96xf32> to vector<16x96xf32>
    %5 = arith.addf %2, %4 : vector<16x96xf32>
    %6 = vector.extract_strided_slice %5 {offsets = [0, 0], sizes = [16, 32], strides = [1, 1]} : vector<16x96xf32> to vector<16x32xf32>
    %7 = vector.extract_strided_slice %5 {offsets = [0, 32], sizes = [16, 32], strides = [1, 1]} : vector<16x96xf32> to vector<16x32xf32>
    %8 = vector.extract_strided_slice %5 {offsets = [0, 64], sizes = [16, 32], strides = [1, 1]} : vector<16x96xf32> to vector<16x32xf32>
    %9 = vector.shape_cast %6 : vector<16x32xf32> to vector<16x4x8xf32>
    %10 = tpu.transpose %9, [1, 0, 2] : vector<16x4x8xf32> -> vector<4x16x8xf32>
    %11 = vector.shape_cast %10 : vector<4x16x8xf32> to vector<64x8xf32>
    %12 = vector.shape_cast %7 : vector<16x32xf32> to vector<16x4x8xf32>
    %13 = tpu.transpose %12, [1, 0, 2] : vector<16x4x8xf32> -> vector<4x16x8xf32>
    %14 = vector.shape_cast %13 : vector<4x16x8xf32> to vector<64x8xf32>
    %15 = vector.shape_cast %8 : vector<16x32xf32> to vector<16x4x8xf32>
    %16 = tpu.transpose %15, [1, 0, 2] : vector<16x4x8xf32> -> vector<4x16x8xf32>
    %17 = vector.shape_cast %16 : vector<4x16x8xf32> to vector<64x8xf32>
    %18 = tpu.transpose %14, [1, 0] : vector<64x8xf32> -> vector<8x64xf32>
    %cst_5 = arith.constant dense<0.000000e+00> : vector<64x64xf32>
    %19 = tpu.matmul %11, %18, %cst_5 {dimension_numbers = #tpu.dot_dimension_numbers<[1], [0], [0], [1], [0, 0, 1, 1], [], []>} : vector<64x8xf32>, vector<8x64xf32>, vector<64x64xf32> -> vector<64x64xf32>
    %c0_6 = arith.constant 0 : index
    %c0_7 = arith.constant 0 : index
    %20 = vector.load %arg5[%c0_6, %c0_7] : memref<64x64xf32, #tpu.memory_space<vmem>>, vector<64x64xf32>
    %21 = arith.addf %19, %20 : vector<64x64xf32>
    %cst_8 = arith.constant dense<0xFF800000> : vector<64xf32>
    %22 = vector.multi_reduction <maximumf>, %21, %cst_8 [1] : vector<64x64xf32> to vector<64xf32>
    %23 = vector.shape_cast %22 : vector<64xf32> to vector<64x1xf32>
    %24 = vector.broadcast %23 : vector<64x1xf32> to vector<64x64xf32>
    %25 = arith.subf %21, %24 : vector<64x64xf32>
    %26 = math.exp %25 : vector<64x64xf32>
    %cst_9 = arith.constant dense<0.000000e+00> : vector<64xf32>
    %27 = vector.multi_reduction <add>, %26, %cst_9 [1] : vector<64x64xf32> to vector<64xf32>
    %28 = vector.shape_cast %27 : vector<64xf32> to vector<64x1xf32>
    %29 = tpu.reciprocal %28 : vector<64x1xf32> -> vector<64x1xf32>
    %30 = vector.broadcast %29 : vector<64x1xf32> to vector<64x64xf32>
    %31 = arith.mulf %26, %30 : vector<64x64xf32>
    %cst_10 = arith.constant dense<0.000000e+00> : vector<64x8xf32>
    %32 = tpu.matmul %31, %17, %cst_10 {dimension_numbers = #tpu.dot_dimension_numbers<[1], [0], [0], [1], [0, 0, 1, 1], [], []>} : vector<64x64xf32>, vector<64x8xf32>, vector<64x8xf32> -> vector<64x8xf32>
    %33 = vector.shape_cast %32 : vector<64x8xf32> to vector<4x16x8xf32>
    %34 = tpu.transpose %33, [1, 0, 2] : vector<4x16x8xf32> -> vector<16x4x8xf32>
    %35 = vector.shape_cast %34 : vector<16x4x8xf32> to vector<16x32xf32>
    %c0_11 = arith.constant 0 : index
    %c0_12 = arith.constant 0 : index
    %36 = vector.load %arg2[%c0_11, %c0_12] : memref<32x32xf32, #tpu.memory_space<vmem>>, vector<32x32xf32>
    %cst_13 = arith.constant dense<0.000000e+00> : vector<16x32xf32>
    %37 = tpu.matmul %35, %36, %cst_13 {dimension_numbers = #tpu.dot_dimension_numbers<[1], [0], [0], [1], [0, 0, 1, 1], [], []>} : vector<16x32xf32>, vector<32x32xf32>, vector<16x32xf32> -> vector<16x32xf32>
    %c0_14 = arith.constant 0 : index
    %c0_15 = arith.constant 0 : index
    %38 = vector.load %arg4[%c0_14, %c0_15] : memref<1x32xf32, #tpu.memory_space<vmem>>, vector<1x32xf32>
    %39 = vector.broadcast %38 : vector<1x32xf32> to vector<16x32xf32>
    %40 = arith.addf %37, %39 : vector<16x32xf32>
    %c0_16 = arith.constant 0 : index
    %c0_17 = arith.constant 0 : index
    %41 = vector.load %arg6[%c0_16, %c0_17] : memref<16x32xf32, #tpu.memory_space<vmem>>, vector<16x32xf32>
    tpu.vector_store %arg6[%c0_16, %c0_17], %40 {strides = array<i32>} : memref<16x32xf32, #tpu.memory_space<vmem>>, vector<16x32xf32>,
    return
  }
}

</mosaic_0001>

<llo_original>
// kernel: tpu_custom_call.1
$region0: #{tpu_custom_call.1}
  #allocation0 [shape = 'u32[]', space=smem, size = 0x4, offset = 0x4, fixed_abs, tag = 'smem constant byte address 0x4 - core index']
  #allocation1 [shape = 'u32[72,128]{1,0:T(1,128)}', space=vmem, size = 0x9000, scoped, tag = 'internal scratch']
  %s0 = inlined_call_operand.hbm [shape: f32[16,32], index: 0, kind: input, shape index: {}]
  %s1 = inlined_call_operand.hbm [shape: f32[32,96], index: 1, kind: input, shape index: {}]
  %s2 = inlined_call_operand.hbm [shape: f32[32,32], index: 2, kind: input, shape index: {}]
  %s3 = inlined_call_operand.vmem [shape: f32[1,96], index: 3, kind: input, shape index: {}]
  %s4 = inlined_call_operand.vmem [shape: f32[1,32], index: 4, kind: input, shape index: {}]
  %s5 = inlined_call_operand.hbm [shape: f32[64,64], index: 5, kind: input, shape index: {}]
  %s6 = inlined_call_operand.hbm [shape: f32[16,32], index: 6, kind: output, shape index: {}]
  %s7 = sld [smem:[#allocation0]]
  $region50: #{tpu_custom_call.1} parent=0
    _
  %s9 = ssub.s32 1, %s7
  %s10 = scalar_select 0, %s9, %s7
  $region1: #{tpu_custom_call.1} parent=0
    #allocation2 [shape = 'u8[8192]{0}', space=vmem, size = 0x2000, scoped, tag = 'input window, operand 0, single buffered']
    #allocation3 [shape = 's32[1]{0}', space=sflag, size = 0x4, scoped, tag = 'scoped memory for tpu_custom_call.1']
    #allocation4 [shape = 's32[1]{0}', space=sflag, size = 0x4, scoped, tag = 'scoped memory for tpu_custom_call.1']
    #allocation5 [shape = 'u8[16384]{0}', space=vmem, size = 0x4000, scoped, tag = 'input window, operand 1, single buffered']
    #allocation6 [shape = 's32[1]{0}', space=sflag, size = 0x4, scoped, tag = 'scoped memory for tpu_custom_call.1']
    #allocation7 [shape = 'u8[16384]{0}', space=vmem, size = 0x4000, scoped, tag = 'input window, operand 2, single buffered']
    #allocation8 [shape = 'u8[32768]{0}', space=vmem, size = 0x8000, scoped, tag = 'input window, operand 5, single buffered']
    #allocation9 [shape = 's32[1]{0}', space=sflag, size = 0x4, scoped, tag = 'scoped memory for tpu_custom_call.1']
    #allocation10 [shape = 'u8[8192]{0}', space=vmem, size = 0x2000, scoped, tag = 'output window, operand 0, single buffered']
    %11 = vsyncpa [#allocation3], 0
    %12 = vsyncpa [#allocation6], 0
    %13 = vsyncpa [#allocation9], 0
    %14 = vsyncpa [#allocation4], 0
    // Predicated region
    $region2: #{tpu_custom_call.1} parent=1 // pred_check
      _
    $region3: #{tpu_custom_call.1} parent=1 // pred_check_branch
      %16 = sbr.rel (0) target = $region5
    $region4: #{tpu_custom_call.1} parent=1 // pred_region
      %18 = vsyncadd [#allocation3], 0
      %s19 = sshll.u32 %s0, 4
      %s20 = int_to_ptr.hbm [resolvable:$true] %s19
      %s21 = sshll.u32 [#allocation2], 4
      %s22 = int_to_ptr.vmem [resolvable:$true] %s21
      %27 = dma.hbm_to_vmem [thread:$0]  %s20, 256, %s22, [#allocation3], 128, 128, 8
    $region5: #{tpu_custom_call.1} parent=1 // pred_fallthru
      _
    // Predicated region
    $region6: #{tpu_custom_call.1} parent=1 // pred_check
      _
    $region7: #{tpu_custom_call.1} parent=1 // pred_check_branch
      %29 = sbr.rel (0) target = $region9
    $region8: #{tpu_custom_call.1} parent=1 // pred_region
      %31 = vsyncadd [#allocation6], 0
      %s32 = sshll.u32 %s1, 4
      %s33 = int_to_ptr.hbm [resolvable:$true] %s32
      %s34 = sshll.u32 [#allocation5], 4
      %s35 = int_to_ptr.vmem [resolvable:$true] %s34
      %40 = dma.hbm_to_vmem [thread:$0]  %s33, 512, %s35, [#allocation6], 128, 128, 8
    $region9: #{tpu_custom_call.1} parent=1 // pred_fallthru
      _
    // Predicated region
    $region10: #{tpu_custom_call.1} parent=1 // pred_check
      _
    $region11: #{tpu_custom_call.1} parent=1 // pred_check_branch
      %42 = sbr.rel (0) target = $region13
    $region12: #{tpu_custom_call.1} parent=1 // pred_region
      %44 = vsyncadd [#allocation6], 0
      %s45 = sshll.u32 %s2, 4
      %s46 = int_to_ptr.hbm [resolvable:$true] %s45
      %s47 = sshll.u32 [#allocation7], 4
      %s48 = int_to_ptr.vmem [resolvable:$true] %s47
      %53 = dma.hbm_to_vmem [thread:$0]  %s46, 512, %s48, [#allocation6], 128, 128, 8
    $region13: #{tpu_custom_call.1} parent=1 // pred_fallthru
      _
    // Predicated region
    $region14: #{tpu_custom_call.1} parent=1 // pred_check
      _
    $region15: #{tpu_custom_call.1} parent=1 // pred_check_branch
      %55 = sbr.rel (0) target = $region17
    $region16: #{tpu_custom_call.1} parent=1 // pred_region
      _
    $region17: #{tpu_custom_call.1} parent=1 // pred_fallthru
      _
    // Predicated region
    $region18: #{tpu_custom_call.1} parent=1 // pred_check
      _
    $region19: #{tpu_custom_call.1} parent=1 // pred_check_branch
      %57 = sbr.rel (0) target = $region21
    $region20: #{tpu_custom_call.1} parent=1 // pred_region
      _
    $region21: #{tpu_custom_call.1} parent=1 // pred_fallthru
      _
    // Predicated region
    $region22: #{tpu_custom_call.1} parent=1 // pred_check
      _
    $region23: #{tpu_custom_call.1} parent=1 // pred_check_branch
      %59 = sbr.rel (0) target = $region25
    $region24: #{tpu_custom_call.1} parent=1 // pred_region
      %61 = vsyncadd [#allocation9], 0
      %s62 = sshll.u32 %s5, 4
      %s63 = int_to_ptr.hbm [resolvable:$true] %s62
      %s64 = sshll.u32 [#allocation8], 4
      %s65 = int_to_ptr.vmem [resolvable:$true] %s64
      %70 = dma.hbm_to_vmem [thread:$0]  %s63, 1024, %s65, [#allocation9], 128, 128, 8
    $region25: #{tpu_custom_call.1} parent=1 // pred_fallthru
      _
    // Predicated region
    $region26: #{tpu_custom_call.1} parent=1 // pred_check
      _
    $region27: #{tpu_custom_call.1} parent=1 // pred_check_branch
      %72 = sbr.rel (0) target = $region29
    $region28: #{tpu_custom_call.1} parent=1 // pred_region
      %74 = dma.done [#allocation3], 256
    $region29: #{tpu_custom_call.1} parent=1 // pred_fallthru
      _
    // Predicated region
    $region30: #{tpu_custom_call.1} parent=1 // pred_check
      _
    $region31: #{tpu_custom_call.1} parent=1 // pred_check_branch
      %76 = sbr.rel (0) target = $region33
    $region32: #{tpu_custom_call.1} parent=1 // pred_region
      %78 = dma.done [#allocation6], 512
    $region33: #{tpu_custom_call.1} parent=1 // pred_fallthru
      _
    // Predicated region
    $region34: #{tpu_custom_call.1} parent=1 // pred_check
      _
    $region35: #{tpu_custom_call.1} parent=1 // pred_check_branch
      %80 = sbr.rel (0) target = $region37
    $region36: #{tpu_custom_call.1} parent=1 // pred_region
      %82 = dma.done [#allocation6], 512
    $region37: #{tpu_custom_call.1} parent=1 // pred_fallthru
      _
    // Predicated region
    $region38: #{tpu_custom_call.1} parent=1 // pred_check
      _
    $region39: #{tpu_custom_call.1} parent=1 // pred_check_branch
      %84 = sbr.rel (0) target = $region41
    $region40: #{tpu_custom_call.1} parent=1 // pred_region
      %86 = dma.done [#allocation9], 1024
    $region41: #{tpu_custom_call.1} parent=1 // pred_fallthru
      _
    %v87 = vld [vmem:[#allocation2] sm:$0xff]
    %v88 = vld [vmem:[#allocation2 + $0x8] sm:$0xff]
    %v89 = vld [vmem:[#allocation5] sm:$0xff]
    %v90 = vld [vmem:[#allocation5 + $0x8] sm:$0xff]
    %v91 = vld [vmem:[#allocation5 + $0x10] sm:$0xff]
    %v92 = vld [vmem:[#allocation5 + $0x18] sm:$0xff]
    %v93 = vld [vmem:[%s3] sm:$0x1]
    %v95 = vperm.slane %v93, 0
    %vm97 = vcmask 261120
    %v99 = vsel %vm97, %v87, 0
    %v102 = vsel %vm97, %v88, 0
    %104 = vmatpush.msra.mxu0 0.0
    %105 = vmatpush.msra.mxu0 0.0
    %106 = vmatpush.msra.mxu0 0.0
    %107 = vmatpush.msra.mxu0 0.0
    %108 = vmatpush.msra.mxu0 0.0
    %109 = vmatpush.msra.mxu0 0.0
    %110 = vmatpush.msra.mxu0 0.0
    %111 = vmatpush.msra.mxu0 0.0
    %112 = vmatpush.msra.mxu0 0.0
    %113 = vmatpush.msra.mxu0 0.0
    %114 = vmatpush.msra.mxu0 0.0
    %115 = vmatpush.msra.mxu0 0.0
    %116 = vmatpush.msra.mxu0 %v92
    %117 = vmatpush.msra.mxu0 %v91
    %118 = vmatpush.msra.mxu0 %v90
    %119 = vmatpush.msra.mxu0 %v89
    %120 = vmatmul.f32.gmra.mxu0 %v99
    %v121 = vpop.f32.mrf.mxu0
    %v122 = vadd.f32 %v95, %v121
    %123 = vmatmul.f32.gmra.mxu0 %v102
    %v124 = vpop.f32.mrf.mxu0
    %v125 = vadd.f32 %v95, %v124
    %126 = vdwg.mxu0
    %129 = vrot.lane.b32.xlu0 %v122, 120
    %v130 = vpop.permute.xlu0 %129
    %131 = vrot.lane.b32.xlu0 %v125, 120
    %v132 = vpop.permute.xlu0 %131
    %135 = vrot.lane.b32.xlu0 %v122, 112
    %v136 = vpop.permute.xlu0 %135
    %137 = vrot.lane.b32.xlu0 %v125, 112
    %v138 = vpop.permute.xlu0 %137
    %141 = vrot.lane.b32.xlu0 %v122, 104
    %v142 = vpop.permute.xlu0 %141
    %143 = vrot.lane.b32.xlu0 %v125, 104
    %v144 = vpop.permute.xlu0 %143
    %v147 = vrot.slane %v136, 4
    %vm148 = vcmask 1047556
    %v149 = vsel %vm148, %v147, %v122
    %v150 = vrot.slane %v122, 4
    %v151 = vsel %vm148, %v136, %v150
    %v153 = vunpack.c.l.s4 1983009808
    %v154 = vunpack.c.0.s8 %v153
    %v155 = vperm.slane %v149, %v154
    %v157 = vunpack.c.l.s4 1983009808
    %v158 = vunpack.c.0.s8 %v157
    %v159 = vperm.slane %v151, %v158
    %v160 = vrot.slane %v142, 4
    %v161 = vsel %vm148, %v160, %v130
    %v162 = vrot.slane %v130, 4
    %v163 = vsel %vm148, %v142, %v162
    %v165 = vunpack.c.l.s4 1983009808
    %v166 = vunpack.c.0.s8 %v165
    %v167 = vperm.slane %v161, %v166
    %v169 = vunpack.c.l.s4 1983009808
    %v170 = vunpack.c.0.s8 %v169
    %v171 = vperm.slane %v163, %v170
    %v172 = vrot.slane %v167, 4
    %v173 = vsel %vm148, %v172, %v155
    %v174 = vrot.slane %v155, 4
    %v175 = vsel %vm148, %v167, %v174
    %v177 = vunpack.c.l.s4 1934713408
    %v178 = vunpack.c.0.s8 %v177
    %v179 = vperm.slane %v173, %v178
    %v181 = vunpack.c.l.s4 1934713408
    %v182 = vunpack.c.0.s8 %v181
    %v183 = vperm.slane %v175, %v182
    %v184 = vrot.slane %v171, 4
    %v185 = vsel %vm148, %v184, %v159
    %v186 = vrot.slane %v159, 4
    %v187 = vsel %vm148, %v171, %v186
    %v189 = vunpack.c.l.s4 1934713408
    %v190 = vunpack.c.0.s8 %v189
    %v191 = vperm.slane %v185, %v190
    %v193 = vunpack.c.l.s4 1934713408
    %v194 = vunpack.c.0.s8 %v193
    %v195 = vperm.slane %v187, %v194
    %v196 = vrot.slane %v179, 4
    %v197 = vsel %vm148, 0.0, %v196
    %v198 = vrot.slane %v183, 4
    %v199 = vsel %vm148, 0.0, %v198
    %v200 = vrot.slane %v191, 4
    %v201 = vsel %vm148, 0.0, %v200
    %v202 = vrot.slane %v195, 4
    %v203 = vsel %vm148, 0.0, %v202
    %v204 = vrot.slane %v138, 4
    %v205 = vsel %vm148, %v204, %v125
    %v206 = vrot.slane %v125, 4
    %v207 = vsel %vm148, %v138, %v206
    %v209 = vunpack.c.l.s4 1983009808
    %v210 = vunpack.c.0.s8 %v209
    %v211 = vperm.slane %v205, %v210
    %v213 = vunpack.c.l.s4 1983009808
    %v214 = vunpack.c.0.s8 %v213
    %v215 = vperm.slane %v207, %v214
    %v216 = vrot.slane %v144, 4
    %v217 = vsel %vm148, %v216, %v132
    %v218 = vrot.slane %v132, 4
    %v219 = vsel %vm148, %v144, %v218
    %v221 = vunpack.c.l.s4 1983009808
    %v222 = vunpack.c.0.s8 %v221
    %v223 = vperm.slane %v217, %v222
    %v225 = vunpack.c.l.s4 1983009808
    %v226 = vunpack.c.0.s8 %v225
    %v227 = vperm.slane %v219, %v226
    %v228 = vrot.slane %v223, 4
    %v229 = vsel %vm148, %v228, %v211
    %v230 = vrot.slane %v211, 4
    %v231 = vsel %vm148, %v223, %v230
    %v233 = vunpack.c.l.s4 1934713408
    %v234 = vunpack.c.0.s8 %v233
    %v235 = vperm.slane %v229, %v234
    %v237 = vunpack.c.l.s4 1934713408
    %v238 = vunpack.c.0.s8 %v237
    %v239 = vperm.slane %v231, %v238
    %v240 = vrot.slane %v227, 4
    %v241 = vsel %vm148, %v240, %v215
    %v242 = vrot.slane %v215, 4
    %v243 = vsel %vm148, %v227, %v242
    %v245 = vunpack.c.l.s4 1934713408
    %v246 = vunpack.c.0.s8 %v245
    %v247 = vperm.slane %v241, %v246
    %v249 = vunpack.c.l.s4 1934713408
    %v250 = vunpack.c.0.s8 %v249
    %v251 = vperm.slane %v243, %v250
    %v252 = vrot.slane %v235, 4
    %v253 = vsel %vm148, 0.0, %v252
    %v254 = vrot.slane %v239, 4
    %v255 = vsel %vm148, 0.0, %v254
    %v256 = vrot.slane %v247, 4
    %v257 = vsel %vm148, 0.0, %v256
    %v258 = vrot.slane %v251, 4
    %v259 = vsel %vm148, 0.0, %v258
    %v260 = vsel %vm148, %v198, %v179
    %v262 = vunpack.c.l.s4 1983009808
    %v263 = vunpack.c.0.s8 %v262
    %v264 = vperm.slane %v260, %v263
    %v265 = vrot.slane %v199, 4
    %v266 = vsel %vm148, %v265, %v197
    %v268 = vunpack.c.l.s4 1983009808
    %v269 = vunpack.c.0.s8 %v268
    %v270 = vperm.slane %v266, %v269
    %v271 = vsel %vm148, %v202, %v191
    %v273 = vunpack.c.l.s4 1983009808
    %v274 = vunpack.c.0.s8 %v273
    %v275 = vperm.slane %v271, %v274
    %v276 = vrot.slane %v203, 4
    %v277 = vsel %vm148, %v276, %v201
    %v279 = vunpack.c.l.s4 1983009808
    %v280 = vunpack.c.0.s8 %v279
    %v281 = vperm.slane %v277, %v280
    %v282 = vrot.slane %v270, 4
    %v283 = vsel %vm148, %v282, %v264
    %v284 = vrot.slane %v264, 4
    %v285 = vsel %vm148, %v270, %v284
    %v287 = vunpack.c.l.s4 1934713408
    %v288 = vunpack.c.0.s8 %v287
    %v289 = vperm.slane %v283, %v288
    %v291 = vunpack.c.l.s4 1934713408
    %v292 = vunpack.c.0.s8 %v291
    %v293 = vperm.slane %v285, %v292
    %v294 = vrot.slane %v281, 4
    %v295 = vsel %vm148, %v294, %v275
    %v296 = vrot.slane %v275, 4
    %v297 = vsel %vm148, %v281, %v296
    %v299 = vunpack.c.l.s4 1934713408
    %v300 = vunpack.c.0.s8 %v299
    %v301 = vperm.slane %v295, %v300
    %v303 = vunpack.c.l.s4 1934713408
    %v304 = vunpack.c.0.s8 %v303
    %v305 = vperm.slane %v297, %v304
    %v306 = vrot.slane %v301, 4
    %v307 = vsel %vm148, %v306, %v289
    %v308 = vrot.slane %v289, 4
    %v309 = vsel %vm148, %v301, %v308
    %v310 = vrot.slane %v305, 4
    %v311 = vsel %vm148, %v310, %v293
    %v312 = vrot.slane %v293, 4
    %v313 = vsel %vm148, %v305, %v312
    %v314 = vsel %vm148, %v254, %v235
    %v316 = vunpack.c.l.s4 1983009808
    %v317 = vunpack.c.0.s8 %v316
    %v318 = vperm.slane %v314, %v317
    %v319 = vrot.slane %v255, 4
    %v320 = vsel %vm148, %v319, %v253
    %v322 = vunpack.c.l.s4 1983009808
    %v323 = vunpack.c.0.s8 %v322
    %v324 = vperm.slane %v320, %v323
    %v325 = vsel %vm148, %v258, %v247
    %v327 = vunpack.c.l.s4 1983009808
    %v328 = vunpack.c.0.s8 %v327
    %v329 = vperm.slane %v325, %v328
    %v330 = vrot.slane %v259, 4
    %v331 = vsel %vm148, %v330, %v257
    %v333 = vunpack.c.l.s4 1983009808
    %v334 = vunpack.c.0.s8 %v333
    %v335 = vperm.slane %v331, %v334
    %v336 = vrot.slane %v324, 4
    %v337 = vsel %vm148, %v336, %v318
    %v338 = vrot.slane %v318, 4
    %v339 = vsel %vm148, %v324, %v338
    %v341 = vunpack.c.l.s4 1934713408
    %v342 = vunpack.c.0.s8 %v341
    %v343 = vperm.slane %v337, %v342
    %v345 = vunpack.c.l.s4 1934713408
    %v346 = vunpack.c.0.s8 %v345
    %v347 = vperm.slane %v339, %v346
    %v348 = vrot.slane %v335, 4
    %v349 = vsel %vm148, %v348, %v329
    %v350 = vrot.slane %v329, 4
    %v351 = vsel %vm148, %v335, %v350
    %v353 = vunpack.c.l.s4 1934713408
    %v354 = vunpack.c.0.s8 %v353
    %v355 = vperm.slane %v349, %v354
    %v357 = vunpack.c.l.s4 1934713408
    %v358 = vunpack.c.0.s8 %v357
    %v359 = vperm.slane %v351, %v358
    %v360 = vrot.slane %v355, 4
    %v361 = vsel %vm148, %v360, %v343
    %v362 = vrot.slane %v343, 4
    %v363 = vsel %vm148, %v355, %v362
    %v364 = vrot.slane %v359, 4
    %v365 = vsel %vm148, %v364, %v347
    %v366 = vrot.slane %v347, 4
    %v367 = vsel %vm148, %v359, %v366
    %368 = vrot.lane.b32.xlu0 %v122, 96
    %v369 = vpop.permute.xlu0 %368
    %370 = vrot.lane.b32.xlu0 %v125, 96
    %v371 = vpop.permute.xlu0 %370
    %372 = vrot.lane.b32.xlu0 %v130, 96
    %v373 = vpop.permute.xlu0 %372
    %374 = vrot.lane.b32.xlu0 %v132, 96
    %v375 = vpop.permute.xlu0 %374
    %376 = vrot.lane.b32.xlu0 %v136, 96
    %v377 = vpop.permute.xlu0 %376
    %378 = vrot.lane.b32.xlu0 %v138, 96
    %v379 = vpop.permute.xlu0 %378
    %380 = vrot.lane.b32.xlu0 %v142, 96
    %v381 = vpop.permute.xlu0 %380
    %382 = vrot.lane.b32.xlu0 %v144, 96
    %v383 = vpop.permute.xlu0 %382
    %v392 = vrot.slane %v377, 4
    %v393 = vsel %vm148, %v392, %v369
    %v394 = vrot.slane %v369, 4
    %v395 = vsel %vm148, %v377, %v394
    %v397 = vunpack.c.l.s4 1983009808
    %v398 = vunpack.c.0.s8 %v397
    %v399 = vperm.slane %v393, %v398
    %v401 = vunpack.c.l.s4 1983009808
    %v402 = vunpack.c.0.s8 %v401
    %v403 = vperm.slane %v395, %v402
    %v404 = vrot.slane %v381, 4
    %v405 = vsel %vm148, %v404, %v373
    %v406 = vrot.slane %v373, 4
    %v407 = vsel %vm148, %v381, %v406
    %v409 = vunpack.c.l.s4 1983009808
    %v410 = vunpack.c.0.s8 %v409
    %v411 = vperm.slane %v405, %v410
    %v413 = vunpack.c.l.s4 1983009808
    %v414 = vunpack.c.0.s8 %v413
    %v415 = vperm.slane %v407, %v414
    %v416 = vrot.slane %v411, 4
    %v417 = vsel %vm148, %v416, %v399
    %v418 = vrot.slane %v399, 4
    %v419 = vsel %vm148, %v411, %v418
    %v421 = vunpack.c.l.s4 1934713408
    %v422 = vunpack.c.0.s8 %v421
    %v423 = vperm.slane %v417, %v422
    %v425 = vunpack.c.l.s4 1934713408
    %v426 = vunpack.c.0.s8 %v425
    %v427 = vperm.slane %v419, %v426
    %v428 = vrot.slane %v415, 4
    %v429 = vsel %vm148, %v428, %v403
    %v430 = vrot.slane %v403, 4
    %v431 = vsel %vm148, %v415, %v430
    %v433 = vunpack.c.l.s4 1934713408
    %v434 = vunpack.c.0.s8 %v433
    %v435 = vperm.slane %v429, %v434
    %v437 = vunpack.c.l.s4 1934713408
    %v438 = vunpack.c.0.s8 %v437
    %v439 = vperm.slane %v431, %v438
    %v440 = vrot.slane %v423, 4
    %v441 = vsel %vm148, 0.0, %v440
    %v442 = vrot.slane %v427, 4
    %v443 = vsel %vm148, 0.0, %v442
    %v444 = vrot.slane %v435, 4
    %v445 = vsel %vm148, 0.0, %v444
    %v446 = vrot.slane %v439, 4
    %v447 = vsel %vm148, 0.0, %v446
    %v448 = vrot.slane %v379, 4
    %v449 = vsel %vm148, %v448, %v371
    %v450 = vrot.slane %v371, 4
    %v451 = vsel %vm148, %v379, %v450
    %v453 = vunpack.c.l.s4 1983009808
    %v454 = vunpack.c.0.s8 %v453
    %v455 = vperm.slane %v449, %v454
    %v457 = vunpack.c.l.s4 1983009808
    %v458 = vunpack.c.0.s8 %v457
    %v459 = vperm.slane %v451, %v458
    %v460 = vrot.slane %v383, 4
    %v461 = vsel %vm148, %v460, %v375
    %v462 = vrot.slane %v375, 4
    %v463 = vsel %vm148, %v383, %v462
    %v465 = vunpack.c.l.s4 1983009808
    %v466 = vunpack.c.0.s8 %v465
    %v467 = vperm.slane %v461, %v466
    %v469 = vunpack.c.l.s4 1983009808
    %v470 = vunpack.c.0.s8 %v469
    %v471 = vperm.slane %v463, %v470
    %v472 = vrot.slane %v467, 4
    %v473 = vsel %vm148, %v472, %v455
    %v474 = vrot.slane %v455, 4
    %v475 = vsel %vm148, %v467, %v474
    %v477 = vunpack.c.l.s4 1934713408
    %v478 = vunpack.c.0.s8 %v477
    %v479 = vperm.slane %v473, %v478
    %v481 = vunpack.c.l.s4 1934713408
    %v482 = vunpack.c.0.s8 %v481
    %v483 = vperm.slane %v475, %v482
    %v484 = vrot.slane %v471, 4
    %v485 = vsel %vm148, %v484, %v459
    %v486 = vrot.slane %v459, 4
    %v487 = vsel %vm148, %v471, %v486
    %v489 = vunpack.c.l.s4 1934713408
    %v490 = vunpack.c.0.s8 %v489
    %v491 = vperm.slane %v485, %v490
    %v493 = vunpack.c.l.s4 1934713408
    %v494 = vunpack.c.0.s8 %v493
    %v495 = vperm.slane %v487, %v494
    %v496 = vrot.slane %v479, 4
    %v497 = vsel %vm148, 0.0, %v496
    %v498 = vrot.slane %v483, 4
    %v499 = vsel %vm148, 0.0, %v498
    %v500 = vrot.slane %v491, 4
    %v501 = vsel %vm148, 0.0, %v500
    %v502 = vrot.slane %v495, 4
    %v503 = vsel %vm148, 0.0, %v502
    %v504 = vsel %vm148, %v442, %v423
    %v506 = vunpack.c.l.s4 1983009808
    %v507 = vunpack.c.0.s8 %v506
    %v508 = vperm.slane %v504, %v507
    %v509 = vrot.slane %v443, 4
    %v510 = vsel %vm148, %v509, %v441
    %v512 = vunpack.c.l.s4 1983009808
    %v513 = vunpack.c.0.s8 %v512
    %v514 = vperm.slane %v510, %v513
    %v515 = vsel %vm148, %v446, %v435
    %v517 = vunpack.c.l.s4 1983009808
    %v518 = vunpack.c.0.s8 %v517
    %v519 = vperm.slane %v515, %v518
    %v520 = vrot.slane %v447, 4
    %v521 = vsel %vm148, %v520, %v445
    %v523 = vunpack.c.l.s4 1983009808
    %v524 = vunpack.c.0.s8 %v523
    %v525 = vperm.slane %v521, %v524
    %v526 = vrot.slane %v514, 4
    %v527 = vsel %vm148, %v526, %v508
    %v528 = vrot.slane %v508, 4
    %v529 = vsel %vm148, %v514, %v528
    %v531 = vunpack.c.l.s4 1934713408
    %v532 = vunpack.c.0.s8 %v531
    %v533 = vperm.slane %v527, %v532
    %v535 = vunpack.c.l.s4 1934713408
    %v536 = vunpack.c.0.s8 %v535
    %v537 = vperm.slane %v529, %v536
    %v538 = vrot.slane %v525, 4
    %v539 = vsel %vm148, %v538, %v519
    %v540 = vrot.slane %v519, 4
    %v541 = vsel %vm148, %v525, %v540
    %v543 = vunpack.c.l.s4 1934713408
    %v544 = vunpack.c.0.s8 %v543
    %v545 = vperm.slane %v539, %v544
    %v547 = vunpack.c.l.s4 1934713408
    %v548 = vunpack.c.0.s8 %v547
    %v549 = vperm.slane %v541, %v548
    %v550 = vrot.slane %v545, 4
    %v551 = vsel %vm148, %v550, %v533
    %v552 = vrot.slane %v533, 4
    %v553 = vsel %vm148, %v545, %v552
    %v554 = vrot.slane %v549, 4
    %v555 = vsel %vm148, %v554, %v537
    %v556 = vrot.slane %v537, 4
    %v557 = vsel %vm148, %v549, %v556
    %v558 = vsel %vm148, %v498, %v479
    %v560 = vunpack.c.l.s4 1983009808
    %v561 = vunpack.c.0.s8 %v560
    %v562 = vperm.slane %v558, %v561
    %v563 = vrot.slane %v499, 4
    %v564 = vsel %vm148, %v563, %v497
    %v566 = vunpack.c.l.s4 1983009808
    %v567 = vunpack.c.0.s8 %v566
    %v568 = vperm.slane %v564, %v567
    %v569 = vsel %vm148, %v502, %v491
    %v571 = vunpack.c.l.s4 1983009808
    %v572 = vunpack.c.0.s8 %v571
    %v573 = vperm.slane %v569, %v572
    %v574 = vrot.slane %v503, 4
    %v575 = vsel %vm148, %v574, %v501
    %v577 = vunpack.c.l.s4 1983009808
    %v578 = vunpack.c.0.s8 %v577
    %v579 = vperm.slane %v575, %v578
    %v580 = vrot.slane %v568, 4
    %v581 = vsel %vm148, %v580, %v562
    %v582 = vrot.slane %v562, 4
    %v583 = vsel %vm148, %v568, %v582
    %v585 = vunpack.c.l.s4 1934713408
    %v586 = vunpack.c.0.s8 %v585
    %v587 = vperm.slane %v581, %v586
    %v589 = vunpack.c.l.s4 1934713408
    %v590 = vunpack.c.0.s8 %v589
    %v591 = vperm.slane %v583, %v590
    %v592 = vrot.slane %v579, 4
    %v593 = vsel %vm148, %v592, %v573
    %v594 = vrot.slane %v573, 4
    %v595 = vsel %vm148, %v579, %v594
    %v597 = vunpack.c.l.s4 1934713408
    %v598 = vunpack.c.0.s8 %v597
    %v599 = vperm.slane %v593, %v598
    %v601 = vunpack.c.l.s4 1934713408
    %v602 = vunpack.c.0.s8 %v601
    %v603 = vperm.slane %v595, %v602
    %v604 = vrot.slane %v599, 4
    %v605 = vsel %vm148, %v604, %v587
    %v606 = vrot.slane %v587, 4
    %v607 = vsel %vm148, %v599, %v606
    %v608 = vrot.slane %v603, 4
    %v609 = vsel %vm148, %v608, %v591
    %v610 = vrot.slane %v591, 4
    %v611 = vsel %vm148, %v603, %v610
    %612 = vrot.lane.b32.xlu0 %v122, 64
    %v613 = vpop.permute.xlu0 %612
    %614 = vrot.lane.b32.xlu0 %v125, 64
    %v615 = vpop.permute.xlu0 %614
    %616 = vrot.lane.b32.xlu0 %v130, 64
    %v617 = vpop.permute.xlu0 %616
    %618 = vrot.lane.b32.xlu0 %v132, 64
    %v619 = vpop.permute.xlu0 %618
    %620 = vrot.lane.b32.xlu0 %v136, 64
    %v621 = vpop.permute.xlu0 %620
    %622 = vrot.lane.b32.xlu0 %v138, 64
    %v623 = vpop.permute.xlu0 %622
    %624 = vrot.lane.b32.xlu0 %v142, 64
    %v625 = vpop.permute.xlu0 %624
    %626 = vrot.lane.b32.xlu0 %v144, 64
    %v627 = vpop.permute.xlu0 %626
    %v636 = vrot.slane %v621, 4
    %v637 = vsel %vm148, %v636, %v613
    %v638 = vrot.slane %v613, 4
    %v639 = vsel %vm148, %v621, %v638
    %v641 = vunpack.c.l.s4 1983009808
    %v642 = vunpack.c.0.s8 %v641
    %v643 = vperm.slane %v637, %v642
    %v645 = vunpack.c.l.s4 1983009808
    %v646 = vunpack.c.0.s8 %v645
    %v647 = vperm.slane %v639, %v646
    %v648 = vrot.slane %v625, 4
    %v649 = vsel %vm148, %v648, %v617
    %v650 = vrot.slane %v617, 4
    %v651 = vsel %vm148, %v625, %v650
    %v653 = vunpack.c.l.s4 1983009808
    %v654 = vunpack.c.0.s8 %v653
    %v655 = vperm.slane %v649, %v654
    %v657 = vunpack.c.l.s4 1983009808
    %v658 = vunpack.c.0.s8 %v657
    %v659 = vperm.slane %v651, %v658
    %v660 = vrot.slane %v655, 4
    %v661 = vsel %vm148, %v660, %v643
    %v662 = vrot.slane %v643, 4
    %v663 = vsel %vm148, %v655, %v662
    %v665 = vunpack.c.l.s4 1934713408
    %v666 = vunpack.c.0.s8 %v665
    %v667 = vperm.slane %v661, %v666
    %v669 = vunpack.c.l.s4 1934713408
    %v670 = vunpack.c.0.s8 %v669
    %v671 = vperm.slane %v663, %v670
    %v672 = vrot.slane %v659, 4
    %v673 = vsel %vm148, %v672, %v647
    %v674 = vrot.slane %v647, 4
    %v675 = vsel %vm148, %v659, %v674
    %v677 = vunpack.c.l.s4 1934713408
    %v678 = vunpack.c.0.s8 %v677
    %v679 = vperm.slane %v673, %v678
    %v681 = vunpack.c.l.s4 1934713408
    %v682 = vunpack.c.0.s8 %v681
    %v683 = vperm.slane %v675, %v682
    %v684 = vrot.slane %v667, 4
    %v685 = vsel %vm148, 0.0, %v684
    %v686 = vrot.slane %v671, 4
    %v687 = vsel %vm148, 0.0, %v686
    %v688 = vrot.slane %v679, 4
    %v689 = vsel %vm148, 0.0, %v688
    %v690 = vrot.slane %v683, 4
    %v691 = vsel %vm148, 0.0, %v690
    %v692 = vrot.slane %v623, 4
    %v693 = vsel %vm148, %v692, %v615
    %v694 = vrot.slane %v615, 4
    %v695 = vsel %vm148, %v623, %v694
    %v697 = vunpack.c.l.s4 1983009808
    %v698 = vunpack.c.0.s8 %v697
    %v699 = vperm.slane %v693, %v698
    %v701 = vunpack.c.l.s4 1983009808
    %v702 = vunpack.c.0.s8 %v701
    %v703 = vperm.slane %v695, %v702
    %v704 = vrot.slane %v627, 4
    %v705 = vsel %vm148, %v704, %v619
    %v706 = vrot.slane %v619, 4
    %v707 = vsel %vm148, %v627, %v706
    %v709 = vunpack.c.l.s4 1983009808
    %v710 = vunpack.c.0.s8 %v709
    %v711 = vperm.slane %v705, %v710
    %v713 = vunpack.c.l.s4 1983009808
    %v714 = vunpack.c.0.s8 %v713
    %v715 = vperm.slane %v707, %v714
    %v716 = vrot.slane %v711, 4
    %v717 = vsel %vm148, %v716, %v699
    %v718 = vrot.slane %v699, 4
    %v719 = vsel %vm148, %v711, %v718
    %v721 = vunpack.c.l.s4 1934713408
    %v722 = vunpack.c.0.s8 %v721
    %v723 = vperm.slane %v717, %v722
    %v725 = vunpack.c.l.s4 1934713408
    %v726 = vunpack.c.0.s8 %v725
    %v727 = vperm.slane %v719, %v726
    %v728 = vrot.slane %v715, 4
    %v729 = vsel %vm148, %v728, %v703
    %v730 = vrot.slane %v703, 4
    %v731 = vsel %vm148, %v715, %v730
    %v733 = vunpack.c.l.s4 1934713408
    %v734 = vunpack.c.0.s8 %v733
    %v735 = vperm.slane %v729, %v734
    %v737 = vunpack.c.l.s4 1934713408
    %v738 = vunpack.c.0.s8 %v737
    %v739 = vperm.slane %v731, %v738
    %v740 = vrot.slane %v723, 4
    %v741 = vsel %vm148, 0.0, %v740
    %v742 = vrot.slane %v727, 4
    %v743 = vsel %vm148, 0.0, %v742
    %v744 = vrot.slane %v735, 4
    %v745 = vsel %vm148, 0.0, %v744
    %v746 = vrot.slane %v739, 4
    %v747 = vsel %vm148, 0.0, %v746
    %v748 = vsel %vm148, %v686, %v667
    %v750 = vunpack.c.l.s4 1983009808
    %v751 = vunpack.c.0.s8 %v750
    %v752 = vperm.slane %v748, %v751
    %v753 = vrot.slane %v687, 4
    %v754 = vsel %vm148, %v753, %v685
    %v756 = vunpack.c.l.s4 1983009808
    %v757 = vunpack.c.0.s8 %v756
    %v758 = vperm.slane %v754, %v757
    %v759 = vsel %vm148, %v690, %v679
    %v761 = vunpack.c.l.s4 1983009808
    %v762 = vunpack.c.0.s8 %v761
    %v763 = vperm.slane %v759, %v762
    %v764 = vrot.slane %v691, 4
    %v765 = vsel %vm148, %v764, %v689
    %v767 = vunpack.c.l.s4 1983009808
    %v768 = vunpack.c.0.s8 %v767
    %v769 = vperm.slane %v765, %v768
    %v770 = vrot.slane %v758, 4
    %v771 = vsel %vm148, %v770, %v752
    %v772 = vrot.slane %v752, 4
    %v773 = vsel %vm148, %v758, %v772
    %v775 = vunpack.c.l.s4 1934713408
    %v776 = vunpack.c.0.s8 %v775
    %v777 = vperm.slane %v771, %v776
    %v779 = vunpack.c.l.s4 1934713408
    %v780 = vunpack.c.0.s8 %v779
    %v781 = vperm.slane %v773, %v780
    %v782 = vrot.slane %v769, 4
    %v783 = vsel %vm148, %v782, %v763
    %v784 = vrot.slane %v763, 4
    %v785 = vsel %vm148, %v769, %v784
    %v787 = vunpack.c.l.s4 1934713408
    %v788 = vunpack.c.0.s8 %v787
    %v789 = vperm.slane %v783, %v788
    %v791 = vunpack.c.l.s4 1934713408
    %v792 = vunpack.c.0.s8 %v791
    %v793 = vperm.slane %v785, %v792
    %v794 = vrot.slane %v789, 4
    %v795 = vsel %vm148, %v794, %v777
    %v796 = vrot.slane %v777, 4
    %v797 = vsel %vm148, %v789, %v796
    %v798 = vrot.slane %v793, 4
    %v799 = vsel %vm148, %v798, %v781
    %v800 = vrot.slane %v781, 4
    %v801 = vsel %vm148, %v793, %v800
    %v802 = vsel %vm148, %v742, %v723
    %v804 = vunpack.c.l.s4 1983009808
    %v805 = vunpack.c.0.s8 %v804
    %v806 = vperm.slane %v802, %v805
    %v807 = vrot.slane %v743, 4
    %v808 = vsel %vm148, %v807, %v741
    %v810 = vunpack.c.l.s4 1983009808
    %v811 = vunpack.c.0.s8 %v810
    %v812 = vperm.slane %v808, %v811
    %v813 = vsel %vm148, %v746, %v735
    %v815 = vunpack.c.l.s4 1983009808
    %v816 = vunpack.c.0.s8 %v815
    %v817 = vperm.slane %v813, %v816
    %v818 = vrot.slane %v747, 4
    %v819 = vsel %vm148, %v818, %v745
    %v821 = vunpack.c.l.s4 1983009808
    %v822 = vunpack.c.0.s8 %v821
    %v823 = vperm.slane %v819, %v822
    %v824 = vrot.slane %v812, 4
    %v825 = vsel %vm148, %v824, %v806
    %v826 = vrot.slane %v806, 4
    %v827 = vsel %vm148, %v812, %v826
    %v829 = vunpack.c.l.s4 1934713408
    %v830 = vunpack.c.0.s8 %v829
    %v831 = vperm.slane %v825, %v830
    %v833 = vunpack.c.l.s4 1934713408
    %v834 = vunpack.c.0.s8 %v833
    %v835 = vperm.slane %v827, %v834
    %v836 = vrot.slane %v823, 4
    %v837 = vsel %vm148, %v836, %v817
    %v838 = vrot.slane %v817, 4
    %v839 = vsel %vm148, %v823, %v838
    %v841 = vunpack.c.l.s4 1934713408
    %v842 = vunpack.c.0.s8 %v841
    %v843 = vperm.slane %v837, %v842
    %v845 = vunpack.c.l.s4 1934713408
    %v846 = vunpack.c.0.s8 %v845
    %v847 = vperm.slane %v839, %v846
    %v848 = vrot.slane %v843, 4
    %v849 = vsel %vm148, %v848, %v831
    %v850 = vrot.slane %v831, 4
    %v851 = vsel %vm148, %v843, %v850
    %v852 = vrot.slane %v847, 4
    %v853 = vsel %vm148, %v852, %v835
    %v854 = vrot.slane %v835, 4
    %v855 = vsel %vm148, %v847, %v854
    %v856 = vld [vmem:[#allocation8] sm:$0xff]
    %v857 = vld [vmem:[#allocation8 + $0x8] sm:$0xff]
    %v858 = vld [vmem:[#allocation8 + $0x10] sm:$0xff]
    %v859 = vld [vmem:[#allocation8 + $0x18] sm:$0xff]
    %v860 = vld [vmem:[#allocation8 + $0x20] sm:$0xff]
    %v861 = vld [vmem:[#allocation8 + $0x28] sm:$0xff]
    %v862 = vld [vmem:[#allocation8 + $0x30] sm:$0xff]
    %v863 = vld [vmem:[#allocation8 + $0x38] sm:$0xff]
    %vm864 = vcmask 64512
    %v866 = vsel %vm864, %v307, 0
    %v869 = vsel %vm864, %v361, 0
    %v872 = vsel %vm864, %v309, 0
    %v875 = vsel %vm864, %v363, 0
    %v878 = vsel %vm864, %v311, 0
    %v881 = vsel %vm864, %v365, 0
    %v884 = vsel %vm864, %v313, 0
    %v887 = vsel %vm864, %v367, 0
    %v890 = vsel %vm864, %v551, 0
    %v893 = vsel %vm864, %v605, 0
    %v896 = vsel %vm864, %v553, 0
    %v899 = vsel %vm864, %v607, 0
    %v902 = vsel %vm864, %v555, 0
    %v905 = vsel %vm864, %v609, 0
    %v908 = vsel %vm864, %v557, 0
    %v911 = vsel %vm864, %v611, 0
    %913 = vmatpush.xpose.msra.mxu0 0.0
    %914 = vmatpush.xpose.msra.mxu0 0.0
    %915 = vmatpush.xpose.msra.mxu0 0.0
    %916 = vmatpush.xpose.msra.mxu0 0.0
    %917 = vmatpush.xpose.msra.mxu0 0.0
    %918 = vmatpush.xpose.msra.mxu0 0.0
    %919 = vmatpush.xpose.msra.mxu0 0.0
    %920 = vmatpush.xpose.msra.mxu0 0.0
    %921 = vmatpush.xpose.msra.mxu0 %v911
    %922 = vmatpush.xpose.msra.mxu0 %v908
    %923 = vmatpush.xpose.msra.mxu0 %v905
    %924 = vmatpush.xpose.msra.mxu0 %v902
    %925 = vmatpush.xpose.msra.mxu0 %v899
    %926 = vmatpush.xpose.msra.mxu0 %v896
    %927 = vmatpush.xpose.msra.mxu0 %v893
    %928 = vmatpush.xpose.msra.mxu0 %v890
    %929 = vmatmul.f32.gmra.mxu0 %v866
    %v930 = vpop.f32.mrf.mxu0
    %v931 = vadd.f32 %v856, %v930
    %932 = vmatmul.f32.gmra.mxu0 %v869
    %v933 = vpop.f32.mrf.mxu0
    %v934 = vadd.f32 %v857, %v933
    %935 = vmatmul.f32.gmra.mxu0 %v872
    %v936 = vpop.f32.mrf.mxu0
    %v937 = vadd.f32 %v858, %v936
    %938 = vmatmul.f32.gmra.mxu0 %v875
    %v939 = vpop.f32.mrf.mxu0
    %v940 = vadd.f32 %v859, %v939
    %941 = vmatmul.f32.gmra.mxu0 %v878
    %v942 = vpop.f32.mrf.mxu0
    %v943 = vadd.f32 %v860, %v942
    %944 = vmatmul.f32.gmra.mxu0 %v881
    %v945 = vpop.f32.mrf.mxu0
    %v946 = vadd.f32 %v861, %v945
    %947 = vmatmul.f32.gmra.mxu0 %v884
    %v948 = vpop.f32.mrf.mxu0
    %v949 = vadd.f32 %v862, %v948
    %950 = vmatmul.f32.gmra.mxu0 %v887
    %v951 = vpop.f32.mrf.mxu0
    %v952 = vadd.f32 %v863, %v951
    %953 = vdwg.mxu0
    %vm954 = vcmask 523264
    %v955 = vsel %vm954, %v931, -inf
    %956 = vmax.xlane.f32.xlu0 %v955
    %v957 = vpop.xlane.xlu0 %956
    %v958 = vsel %vm954, %v934, -inf
    %959 = vmax.xlane.f32.xlu0 %v958
    %v960 = vpop.xlane.xlu0 %959
    %v961 = vsel %vm954, %v937, -inf
    %962 = vmax.xlane.f32.xlu0 %v961
    %v963 = vpop.xlane.xlu0 %962
    %v964 = vsel %vm954, %v940, -inf
    %965 = vmax.xlane.f32.xlu0 %v964
    %v966 = vpop.xlane.xlu0 %965
    %v967 = vsel %vm954, %v943, -inf
    %968 = vmax.xlane.f32.xlu0 %v967
    %v969 = vpop.xlane.xlu0 %968
    %v970 = vsel %vm954, %v946, -inf
    %971 = vmax.xlane.f32.xlu0 %v970
    %v972 = vpop.xlane.xlu0 %971
    %v973 = vsel %vm954, %v949, -inf
    %974 = vmax.xlane.f32.xlu0 %v973
    %v975 = vpop.xlane.xlu0 %974
    %v976 = vsel %vm954, %v952, -inf
    %977 = vmax.xlane.f32.xlu0 %v976
    %v978 = vpop.xlane.xlu0 %977
    %v979 = vsub.f32 %v931, %v957
    %v980 = vsub.f32 %v934, %v960
    %v981 = vsub.f32 %v937, %v963
    %v982 = vsub.f32 %v940, %v966
    %v983 = vsub.f32 %v943, %v969
    %v984 = vsub.f32 %v946, %v972
    %v985 = vsub.f32 %v949, %v975
    %v986 = vsub.f32 %v952, %v978
    %v987 = vmul.f32 %v979, 1.442695
    %v988 = vpow.pop %v987
    %v989 = vmul.f32 %v980, 1.442695
    %v990 = vpow.pop %v989
    %v991 = vmul.f32 %v981, 1.442695
    %v992 = vpow.pop %v991
    %v993 = vmul.f32 %v982, 1.442695
    %v994 = vpow.pop %v993
    %v995 = vmul.f32 %v983, 1.442695
    %v996 = vpow.pop %v995
    %v997 = vmul.f32 %v984, 1.442695
    %v998 = vpow.pop %v997
    %v999 = vmul.f32 %v985, 1.442695
    %v1000 = vpow.pop %v999
    %v1001 = vmul.f32 %v986, 1.442695
    %v1002 = vpow.pop %v1001
    %v1003 = vsel %vm954, %v988, 0.0
    %1004 = vadd.xlane.f32.xlu0 %v1003
    %v1005 = vpop.xlane.xlu0 %1004
    %v1006 = vsel %vm954, %v990, 0.0
    %1007 = vadd.xlane.f32.xlu0 %v1006
    %v1008 = vpop.xlane.xlu0 %1007
    %v1009 = vsel %vm954, %v992, 0.0
    %1010 = vadd.xlane.f32.xlu0 %v1009
    %v1011 = vpop.xlane.xlu0 %1010
    %v1012 = vsel %vm954, %v994, 0.0
    %1013 = vadd.xlane.f32.xlu0 %v1012
    %v1014 = vpop.xlane.xlu0 %1013
    %v1015 = vsel %vm954, %v996, 0.0
    %1016 = vadd.xlane.f32.xlu0 %v1015
    %v1017 = vpop.xlane.xlu0 %1016
    %v1018 = vsel %vm954, %v998, 0.0
    %1019 = vadd.xlane.f32.xlu0 %v1018
    %v1020 = vpop.xlane.xlu0 %1019
    %v1021 = vsel %vm954, %v1000, 0.0
    %1022 = vadd.xlane.f32.xlu0 %v1021
    %v1023 = vpop.xlane.xlu0 %1022
    %v1024 = vsel %vm954, %v1002, 0.0
    %1025 = vadd.xlane.f32.xlu0 %v1024
    %v1026 = vpop.xlane.xlu0 %1025
    %v1027 = vrcp.pop %v1005
    %v1028 = vmul.f32 %v1005, %v1027
    %v1029 = vsub.f32 1.0, %v1028
    %v1030 = vmul.f32 %v1027, %v1029
    %v1031 = vadd.f32 %v1027, %v1030
    %vm1032 = vweird.f32 %v1005
    %vm1033 = vweird.f32 %v1027
    %vm1034 = vmor %vm1032, %vm1033
    %v1035 = vsel %vm1034, %v1027, %v1031
    %v1036 = vand.u32 2147483647, %v1005
    %vm1037 = vcmp.eq.f32.partialorder %v1036, 8.507059e+37
    %v1038 = vand.u32 %v1005, 2147483648
    %v1039 = vor.u32 1.1754944e-38, %v1038
    %v1040 = vsel %vm1037, %v1039, %v1035
    %v1041 = vrcp.pop %v1008
    %v1042 = vmul.f32 %v1008, %v1041
    %v1043 = vsub.f32 1.0, %v1042
    %v1044 = vmul.f32 %v1041, %v1043
    %v1045 = vadd.f32 %v1041, %v1044
    %vm1046 = vweird.f32 %v1008
    %vm1047 = vweird.f32 %v1041
    %vm1048 = vmor %vm1046, %vm1047
    %v1049 = vsel %vm1048, %v1041, %v1045
    %v1050 = vand.u32 2147483647, %v1008
    %vm1051 = vcmp.eq.f32.partialorder %v1050, 8.507059e+37
    %v1052 = vand.u32 %v1008, 2147483648
    %v1053 = vor.u32 1.1754944e-38, %v1052
    %v1054 = vsel %vm1051, %v1053, %v1049
    %v1055 = vrcp.pop %v1011
    %v1056 = vmul.f32 %v1011, %v1055
    %v1057 = vsub.f32 1.0, %v1056
    %v1058 = vmul.f32 %v1055, %v1057
    %v1059 = vadd.f32 %v1055, %v1058
    %vm1060 = vweird.f32 %v1011
    %vm1061 = vweird.f32 %v1055
    %vm1062 = vmor %vm1060, %vm1061
    %v1063 = vsel %vm1062, %v1055, %v1059
    %v1064 = vand.u32 2147483647, %v1011
    %vm1065 = vcmp.eq.f32.partialorder %v1064, 8.507059e+37
    %v1066 = vand.u32 %v1011, 2147483648
    %v1067 = vor.u32 1.1754944e-38, %v1066
    %v1068 = vsel %vm1065, %v1067, %v1063
    %v1069 = vrcp.pop %v1014
    %v1070 = vmul.f32 %v1014, %v1069
    %v1071 = vsub.f32 1.0, %v1070
    %v1072 = vmul.f32 %v1069, %v1071
    %v1073 = vadd.f32 %v1069, %v1072
    %vm1074 = vweird.f32 %v1014
    %vm1075 = vweird.f32 %v1069
    %vm1076 = vmor %vm1074, %vm1075
    %v1077 = vsel %vm1076, %v1069, %v1073
    %v1078 = vand.u32 2147483647, %v1014
    %vm1079 = vcmp.eq.f32.partialorder %v1078, 8.507059e+37
    %v1080 = vand.u32 %v1014, 2147483648
    %v1081 = vor.u32 1.1754944e-38, %v1080
    %v1082 = vsel %vm1079, %v1081, %v1077
    %v1083 = vrcp.pop %v1017
    %v1084 = vmul.f32 %v1017, %v1083
    %v1085 = vsub.f32 1.0, %v1084
    %v1086 = vmul.f32 %v1083, %v1085
    %v1087 = vadd.f32 %v1083, %v1086
    %vm1088 = vweird.f32 %v1017
    %vm1089 = vweird.f32 %v1083
    %vm1090 = vmor %vm1088, %vm1089
    %v1091 = vsel %vm1090, %v1083, %v1087
    %v1092 = vand.u32 2147483647, %v1017
    %vm1093 = vcmp.eq.f32.partialorder %v1092, 8.507059e+37
    %v1094 = vand.u32 %v1017, 2147483648
    %v1095 = vor.u32 1.1754944e-38, %v1094
    %v1096 = vsel %vm1093, %v1095, %v1091
    %v1097 = vrcp.pop %v1020
    %v1098 = vmul.f32 %v1020, %v1097
    %v1099 = vsub.f32 1.0, %v1098
    %v1100 = vmul.f32 %v1097, %v1099
    %v1101 = vadd.f32 %v1097, %v1100
    %vm1102 = vweird.f32 %v1020
    %vm1103 = vweird.f32 %v1097
    %vm1104 = vmor %vm1102, %vm1103
    %v1105 = vsel %vm1104, %v1097, %v1101
    %v1106 = vand.u32 2147483647, %v1020
    %vm1107 = vcmp.eq.f32.partialorder %v1106, 8.507059e+37
    %v1108 = vand.u32 %v1020, 2147483648
    %v1109 = vor.u32 1.1754944e-38, %v1108
    %v1110 = vsel %vm1107, %v1109, %v1105
    %v1111 = vrcp.pop %v1023
    %v1112 = vmul.f32 %v1023, %v1111
    %v1113 = vsub.f32 1.0, %v1112
    %v1114 = vmul.f32 %v1111, %v1113
    %v1115 = vadd.f32 %v1111, %v1114
    %vm1116 = vweird.f32 %v1023
    %vm1117 = vweird.f32 %v1111
    %vm1118 = vmor %vm1116, %vm1117
    %v1119 = vsel %vm1118, %v1111, %v1115
    %v1120 = vand.u32 2147483647, %v1023
    %vm1121 = vcmp.eq.f32.partialorder %v1120, 8.507059e+37
    %v1122 = vand.u32 %v1023, 2147483648
    %v1123 = vor.u32 1.1754944e-38, %v1122
    %v1124 = vsel %vm1121, %v1123, %v1119
    %v1125 = vrcp.pop %v1026
    %v1126 = vmul.f32 %v1026, %v1125
    %v1127 = vsub.f32 1.0, %v1126
    %v1128 = vmul.f32 %v1125, %v1127
    %v1129 = vadd.f32 %v1125, %v1128
    %vm1130 = vweird.f32 %v1026
    %vm1131 = vweird.f32 %v1125
    %vm1132 = vmor %vm1130, %vm1131
    %v1133 = vsel %vm1132, %v1125, %v1129
    %v1134 = vand.u32 2147483647, %v1026
    %vm1135 = vcmp.eq.f32.partialorder %v1134, 8.507059e+37
    %v1136 = vand.u32 %v1026, 2147483648
    %v1137 = vor.u32 1.1754944e-38, %v1136
    %v1138 = vsel %vm1135, %v1137, %v1133
    %v1139 = vmul.f32 %v988, %v1040
    %v1140 = vmul.f32 %v990, %v1054
    %v1141 = vmul.f32 %v992, %v1068
    %v1142 = vmul.f32 %v994, %v1082
    %v1143 = vmul.f32 %v996, %v1096
    %v1144 = vmul.f32 %v998, %v1110
    %v1145 = vmul.f32 %v1000, %v1124
    %v1146 = vmul.f32 %v1002, %v1138
    %v1148 = vsel %vm954, %v1139, 0
    %v1151 = vsel %vm954, %v1140, 0
    %v1154 = vsel %vm954, %v1141, 0
    %v1157 = vsel %vm954, %v1142, 0
    %v1160 = vsel %vm954, %v1143, 0
    %v1163 = vsel %vm954, %v1144, 0
    %v1166 = vsel %vm954, %v1145, 0
    %v1169 = vsel %vm954, %v1146, 0
    %1171 = vmatpush.msra.mxu0 0.0
    %1172 = vmatpush.msra.mxu0 0.0
    %1173 = vmatpush.msra.mxu0 0.0
    %1174 = vmatpush.msra.mxu0 0.0
    %1175 = vmatpush.msra.mxu0 0.0
    %1176 = vmatpush.msra.mxu0 0.0
    %1177 = vmatpush.msra.mxu0 0.0
    %1178 = vmatpush.msra.mxu0 0.0
    %1179 = vmatpush.msra.mxu0 %v855
    %1180 = vmatpush.msra.mxu0 %v801
    %1181 = vmatpush.msra.mxu0 %v853
    %1182 = vmatpush.msra.mxu0 %v799
    %1183 = vmatpush.msra.mxu0 %v851
    %1184 = vmatpush.msra.mxu0 %v797
    %1185 = vmatpush.msra.mxu0 %v849
    %1186 = vmatpush.msra.mxu0 %v795
    %1187 = vmatmul.f32.gmra.mxu0 %v1148
    %v1188 = vpop.f32.mrf.mxu0
    %v1189 = vadd.f32 0.0, %v1188
    %1190 = vmatmul.f32.gmra.mxu0 %v1151
    %v1191 = vpop.f32.mrf.mxu0
    %v1192 = vadd.f32 0.0, %v1191
    %1193 = vmatmul.f32.gmra.mxu0 %v1154
    %v1194 = vpop.f32.mrf.mxu0
    %v1195 = vadd.f32 0.0, %v1194
    %1196 = vmatmul.f32.gmra.mxu0 %v1157
    %v1197 = vpop.f32.mrf.mxu0
    %v1198 = vadd.f32 0.0, %v1197
    %1199 = vmatmul.f32.gmra.mxu0 %v1160
    %v1200 = vpop.f32.mrf.mxu0
    %v1201 = vadd.f32 0.0, %v1200
    %1202 = vmatmul.f32.gmra.mxu0 %v1163
    %v1203 = vpop.f32.mrf.mxu0
    %v1204 = vadd.f32 0.0, %v1203
    %1205 = vmatmul.f32.gmra.mxu0 %v1166
    %v1206 = vpop.f32.mrf.mxu0
    %v1207 = vadd.f32 0.0, %v1206
    %1208 = vmatmul.f32.gmra.mxu0 %v1169
    %v1209 = vpop.f32.mrf.mxu0
    %v1210 = vadd.f32 0.0, %v1209
    %1211 = vdwg.mxu0
    %v1212 = vrot.slane %v1201, 4
    %v1213 = vsel %vm148, %v1212, %v1189
    %v1214 = vrot.slane %v1189, 4
    %v1215 = vsel %vm148, %v1201, %v1214
    %v1217 = vunpack.c.l.s4 1983009808
    %v1218 = vunpack.c.0.s8 %v1217
    %v1219 = vperm.slane %v1213, %v1218
    %v1221 = vunpack.c.l.s4 1983009808
    %v1222 = vunpack.c.0.s8 %v1221
    %v1223 = vperm.slane %v1215, %v1222
    %v1224 = vrot.slane %v1207, 4
    %v1225 = vsel %vm148, %v1224, %v1195
    %v1226 = vrot.slane %v1195, 4
    %v1227 = vsel %vm148, %v1207, %v1226
    %v1229 = vunpack.c.l.s4 1983009808
    %v1230 = vunpack.c.0.s8 %v1229
    %v1231 = vperm.slane %v1225, %v1230
    %v1233 = vunpack.c.l.s4 1983009808
    %v1234 = vunpack.c.0.s8 %v1233
    %v1235 = vperm.slane %v1227, %v1234
    %v1236 = vrot.slane %v1231, 4
    %v1237 = vsel %vm148, %v1236, %v1219
    %v1238 = vrot.slane %v1219, 4
    %v1239 = vsel %vm148, %v1231, %v1238
    %v1241 = vunpack.c.l.s4 1934713408
    %v1242 = vunpack.c.0.s8 %v1241
    %v1243 = vperm.slane %v1237, %v1242
    %v1245 = vunpack.c.l.s4 1934713408
    %v1246 = vunpack.c.0.s8 %v1245
    %v1247 = vperm.slane %v1239, %v1246
    %v1248 = vrot.slane %v1235, 4
    %v1249 = vsel %vm148, %v1248, %v1223
    %v1250 = vrot.slane %v1223, 4
    %v1251 = vsel %vm148, %v1235, %v1250
    %v1253 = vunpack.c.l.s4 1934713408
    %v1254 = vunpack.c.0.s8 %v1253
    %v1255 = vperm.slane %v1249, %v1254
    %v1257 = vunpack.c.l.s4 1934713408
    %v1258 = vunpack.c.0.s8 %v1257
    %v1259 = vperm.slane %v1251, %v1258
    %v1260 = vrot.slane %v1243, 4
    %v1261 = vsel %vm148, 0.0, %v1260
    %v1262 = vrot.slane %v1247, 4
    %v1263 = vsel %vm148, 0.0, %v1262
    %v1264 = vrot.slane %v1255, 4
    %v1265 = vsel %vm148, 0.0, %v1264
    %v1266 = vrot.slane %v1259, 4
    %v1267 = vsel %vm148, 0.0, %v1266
    %v1268 = vrot.slane %v1204, 4
    %v1269 = vsel %vm148, %v1268, %v1192
    %v1270 = vrot.slane %v1192, 4
    %v1271 = vsel %vm148, %v1204, %v1270
    %v1273 = vunpack.c.l.s4 1983009808
    %v1274 = vunpack.c.0.s8 %v1273
    %v1275 = vperm.slane %v1269, %v1274
    %v1277 = vunpack.c.l.s4 1983009808
    %v1278 = vunpack.c.0.s8 %v1277
    %v1279 = vperm.slane %v1271, %v1278
    %v1280 = vrot.slane %v1210, 4
    %v1281 = vsel %vm148, %v1280, %v1198
    %v1282 = vrot.slane %v1198, 4
    %v1283 = vsel %vm148, %v1210, %v1282
    %v1285 = vunpack.c.l.s4 1983009808
    %v1286 = vunpack.c.0.s8 %v1285
    %v1287 = vperm.slane %v1281, %v1286
    %v1289 = vunpack.c.l.s4 1983009808
    %v1290 = vunpack.c.0.s8 %v1289
    %v1291 = vperm.slane %v1283, %v1290
    %v1292 = vrot.slane %v1287, 4
    %v1293 = vsel %vm148, %v1292, %v1275
    %v1294 = vrot.slane %v1275, 4
    %v1295 = vsel %vm148, %v1287, %v1294
    %v1297 = vunpack.c.l.s4 1934713408
    %v1298 = vunpack.c.0.s8 %v1297
    %v1299 = vperm.slane %v1293, %v1298
    %v1301 = vunpack.c.l.s4 1934713408
    %v1302 = vunpack.c.0.s8 %v1301
    %v1303 = vperm.slane %v1295, %v1302
    %v1304 = vrot.slane %v1291, 4
    %v1305 = vsel %vm148, %v1304, %v1279
    %v1306 = vrot.slane %v1279, 4
    %v1307 = vsel %vm148, %v1291, %v1306
    %v1309 = vunpack.c.l.s4 1934713408
    %v1310 = vunpack.c.0.s8 %v1309
    %v1311 = vperm.slane %v1305, %v1310
    %v1313 = vunpack.c.l.s4 1934713408
    %v1314 = vunpack.c.0.s8 %v1313
    %v1315 = vperm.slane %v1307, %v1314
    %v1316 = vrot.slane %v1299, 4
    %v1317 = vsel %vm148, 0.0, %v1316
    %v1318 = vrot.slane %v1303, 4
    %v1319 = vsel %vm148, 0.0, %v1318
    %v1320 = vrot.slane %v1311, 4
    %v1321 = vsel %vm148, 0.0, %v1320
    %v1322 = vrot.slane %v1315, 4
    %v1323 = vsel %vm148, 0.0, %v1322
    %v1324 = vsel %vm148, %v1262, %v1243
    %v1326 = vunpack.c.l.s4 1983009808
    %v1327 = vunpack.c.0.s8 %v1326
    %v1328 = vperm.slane %v1324, %v1327
    %v1329 = vrot.slane %v1263, 4
    %v1330 = vsel %vm148, %v1329, %v1261
    %v1332 = vunpack.c.l.s4 1983009808
    %v1333 = vunpack.c.0.s8 %v1332
    %v1334 = vperm.slane %v1330, %v1333
    %v1335 = vsel %vm148, %v1266, %v1255
    %v1337 = vunpack.c.l.s4 1983009808
    %v1338 = vunpack.c.0.s8 %v1337
    %v1339 = vperm.slane %v1335, %v1338
    %v1340 = vrot.slane %v1267, 4
    %v1341 = vsel %vm148, %v1340, %v1265
    %v1343 = vunpack.c.l.s4 1983009808
    %v1344 = vunpack.c.0.s8 %v1343
    %v1345 = vperm.slane %v1341, %v1344
    %v1346 = vrot.slane %v1334, 4
    %v1347 = vsel %vm148, %v1346, %v1328
    %v1348 = vrot.slane %v1328, 4
    %v1349 = vsel %vm148, %v1334, %v1348
    %v1351 = vunpack.c.l.s4 1934713408
    %v1352 = vunpack.c.0.s8 %v1351
    %v1353 = vperm.slane %v1347, %v1352
    %v1355 = vunpack.c.l.s4 1934713408
    %v1356 = vunpack.c.0.s8 %v1355
    %v1357 = vperm.slane %v1349, %v1356
    %v1358 = vrot.slane %v1345, 4
    %v1359 = vsel %vm148, %v1358, %v1339
    %v1360 = vrot.slane %v1339, 4
    %v1361 = vsel %vm148, %v1345, %v1360
    %v1363 = vunpack.c.l.s4 1934713408
    %v1364 = vunpack.c.0.s8 %v1363
    %v1365 = vperm.slane %v1359, %v1364
    %v1367 = vunpack.c.l.s4 1934713408
    %v1368 = vunpack.c.0.s8 %v1367
    %v1369 = vperm.slane %v1361, %v1368
    %v1370 = vrot.slane %v1365, 4
    %v1371 = vsel %vm148, %v1370, %v1353
    %v1372 = vrot.slane %v1353, 4
    %v1373 = vsel %vm148, %v1365, %v1372
    %v1374 = vrot.slane %v1369, 4
    %v1375 = vsel %vm148, %v1374, %v1357
    %v1376 = vrot.slane %v1357, 4
    %v1377 = vsel %vm148, %v1369, %v1376
    %v1378 = vsel %vm148, %v1318, %v1299
    %v1380 = vunpack.c.l.s4 1983009808
    %v1381 = vunpack.c.0.s8 %v1380
    %v1382 = vperm.slane %v1378, %v1381
    %v1383 = vrot.slane %v1319, 4
    %v1384 = vsel %vm148, %v1383, %v1317
    %v1386 = vunpack.c.l.s4 1983009808
    %v1387 = vunpack.c.0.s8 %v1386
    %v1388 = vperm.slane %v1384, %v1387
    %v1389 = vsel %vm148, %v1322, %v1311
    %v1391 = vunpack.c.l.s4 1983009808
    %v1392 = vunpack.c.0.s8 %v1391
    %v1393 = vperm.slane %v1389, %v1392
    %v1394 = vrot.slane %v1323, 4
    %v1395 = vsel %vm148, %v1394, %v1321
    %v1397 = vunpack.c.l.s4 1983009808
    %v1398 = vunpack.c.0.s8 %v1397
    %v1399 = vperm.slane %v1395, %v1398
    %v1400 = vrot.slane %v1388, 4
    %v1401 = vsel %vm148, %v1400, %v1382
    %v1402 = vrot.slane %v1382, 4
    %v1403 = vsel %vm148, %v1388, %v1402
    %v1405 = vunpack.c.l.s4 1934713408
    %v1406 = vunpack.c.0.s8 %v1405
    %v1407 = vperm.slane %v1401, %v1406
    %v1409 = vunpack.c.l.s4 1934713408
    %v1410 = vunpack.c.0.s8 %v1409
    %v1411 = vperm.slane %v1403, %v1410
    %v1412 = vrot.slane %v1399, 4
    %v1413 = vsel %vm148, %v1412, %v1393
    %v1414 = vrot.slane %v1393, 4
    %v1415 = vsel %vm148, %v1399, %v1414
    %v1417 = vunpack.c.l.s4 1934713408
    %v1418 = vunpack.c.0.s8 %v1417
    %v1419 = vperm.slane %v1413, %v1418
    %v1421 = vunpack.c.l.s4 1934713408
    %v1422 = vunpack.c.0.s8 %v1421
    %v1423 = vperm.slane %v1415, %v1422
    %v1424 = vrot.slane %v1419, 4
    %v1425 = vsel %vm148, %v1424, %v1407
    %v1426 = vrot.slane %v1407, 4
    %v1427 = vsel %vm148, %v1419, %v1426
    %v1428 = vrot.slane %v1423, 4
    %v1429 = vsel %vm148, %v1428, %v1411
    %v1430 = vrot.slane %v1411, 4
    %v1431 = vsel %vm148, %v1423, %v1430
    %1434 = vrot.lane.b32.xlu0 %v1373, 8
    %v1435 = vpop.permute.xlu0 %1434
    %1436 = vrot.lane.b32.xlu0 %v1427, 8
    %v1437 = vpop.permute.xlu0 %1436
    %1442 = vrot.lane.b32.xlu0 %v1375, 16
    %v1443 = vpop.permute.xlu0 %1442
    %1444 = vrot.lane.b32.xlu0 %v1429, 16
    %v1445 = vpop.permute.xlu0 %1444
    %1450 = vrot.lane.b32.xlu0 %v1377, 24
    %v1451 = vpop.permute.xlu0 %1450
    %1452 = vrot.lane.b32.xlu0 %v1431, 24
    %v1453 = vpop.permute.xlu0 %1452
    %v1456 = vsel %vm864, %v1371, %v1435
    %v1457 = vsel %vm864, %v1425, %v1437
    %vm1458 = vcmask 130048
    %v1459 = vsel %vm1458, %v1456, %v1443
    %v1460 = vsel %vm1458, %v1457, %v1445
    %vm1461 = vcmask 195584
    %v1462 = vsel %vm1461, %v1459, %v1451
    %v1463 = vsel %vm1461, %v1460, %v1453
    %v1464 = vld [vmem:[#allocation7] sm:$0xff]
    %v1465 = vld [vmem:[#allocation7 + $0x8] sm:$0xff]
    %v1466 = vld [vmem:[#allocation7 + $0x10] sm:$0xff]
    %v1467 = vld [vmem:[#allocation7 + $0x18] sm:$0xff]
    %v1468 = vld [vmem:[%s4] sm:$0x1]
    %v1470 = vperm.slane %v1468, 0
    %v1473 = vsel %vm97, %v1462, 0
    %v1476 = vsel %vm97, %v1463, 0
    %1478 = vmatpush.msra.mxu0 0.0
    %1479 = vmatpush.msra.mxu0 0.0
    %1480 = vmatpush.msra.mxu0 0.0
    %1481 = vmatpush.msra.mxu0 0.0
    %1482 = vmatpush.msra.mxu0 0.0
    %1483 = vmatpush.msra.mxu0 0.0
    %1484 = vmatpush.msra.mxu0 0.0
    %1485 = vmatpush.msra.mxu0 0.0
    %1486 = vmatpush.msra.mxu0 0.0
    %1487 = vmatpush.msra.mxu0 0.0
    %1488 = vmatpush.msra.mxu0 0.0
    %1489 = vmatpush.msra.mxu0 0.0
    %1490 = vmatpush.msra.mxu0 %v1467
    %1491 = vmatpush.msra.mxu0 %v1466
    %1492 = vmatpush.msra.mxu0 %v1465
    %1493 = vmatpush.msra.mxu0 %v1464
    %1494 = vmatmul.f32.gmra.mxu0 %v1473
    %v1495 = vpop.f32.mrf.mxu0
    %v1496 = vadd.f32 %v1470, %v1495
    %1497 = vmatmul.f32.gmra.mxu0 %v1476
    %v1498 = vpop.f32.mrf.mxu0
    %v1499 = vadd.f32 %v1470, %v1498
    %1500 = vdwg.mxu0
    %1501 = vst.msk [vmem:[#allocation10] sm:$0xff] %vm97, %v1496
    %1502 = vst.msk [vmem:[#allocation10 + $0x8] sm:$0xff] %vm97, %v1499
    // Predicated region
    $region42: #{tpu_custom_call.1} parent=1 // pred_check
      _
    $region43: #{tpu_custom_call.1} parent=1 // pred_check_branch
      %1504 = sbr.rel (0) target = $region45
    $region44: #{tpu_custom_call.1} parent=1 // pred_region
      %1506 = vsyncadd [#allocation4], 0
      %s1507 = sshll.u32 [#allocation10], 4
      %s1508 = int_to_ptr.vmem [resolvable:$true] %s1507
      %s1509 = sshll.u32 %s6, 4
      %s1510 = int_to_ptr.hbm [resolvable:$true] %s1509
      %1515 = dma.vmem_to_hbm [thread:$0]  %s1508, 256, %s1510, [#allocation4], 128, 128, 8
    $region45: #{tpu_custom_call.1} parent=1 // pred_fallthru
      _
    // Predicated region
    $region46: #{tpu_custom_call.1} parent=1 // pred_check
      _
    $region47: #{tpu_custom_call.1} parent=1 // pred_check_branch
      %1517 = sbr.rel (0) target = $region49
    $region48: #{tpu_custom_call.1} parent=1 // pred_region
      %1519 = dma.done [#allocation4], 256
    $region49: #{tpu_custom_call.1} parent=1 // pred_fallthru
      _
    %1520 = vsyncpa [#allocation3], 1
    %1521 = vsyncpa [#allocation6], 1
    %1522 = vsyncpa [#allocation9], 1
    %1523 = vsyncpa [#allocation4], 1

</llo_original>
